<compile_context>
chip_gen: v6e
topology: v6e:2x2x1
jax: 0.10.0
libtpu: 0.0.40
codegen_flags: <defaults>
</compile_context>

<pallas_src>
import functools

import jax
import jax.numpy as jnp
from jax.experimental import pallas as pl
from jax.experimental.pallas import tpu as pltpu


def fuse_mgru_params(params):
    """Fuse the per-gate weights into lane-dense (in, 4H) slabs.  Call once."""
    H = params["wu_h"].shape[0]
    dt = params["wu_h"].dtype
    zeros_hh = jnp.zeros((H, H), dt)
    # x-side columns: [update | reset | memory | h_tilde]
    wx_all = jnp.concatenate(
        [params["wu_x"], params["wr_x"], params["wm_x"], params["wt_x"]], axis=1)
    # hidden-side (the h_tilde hidden path uses reset*hidden later -> zero block)
    wh_all = jnp.concatenate(
        [params["wu_h"], params["wr_h"], params["wm_h"], zeros_hh], axis=1)
    # mem_para-side: only the memory-gate block is non-zero
    wd_all = jnp.concatenate(
        [zeros_hh, zeros_hh, params["wm_d"], zeros_hh], axis=1)
    b_all = jnp.concatenate(
        [params["bu"], params["br"], params["bm"], params["bt"]], axis=1)
    return dict(wx_all=wx_all, wh_all=wh_all, wd_all=wd_all, b_all=b_all,
                wt_h=params["wt_h"], wo=params["wo"], bo=params["bo"])


def _mgru_kernel(k,
                 sample_ref, hiddens_ref, mem_para_ref,
                 wx_all_ref, wh_all_ref, wd_all_ref, b_all_ref,
                 wt_h_ref, wo_ref, bo_ref,
                 out_ref, upd_hiddens_ref, mem_gate_ref):
    f32 = jnp.float32
    H = wt_h_ref.shape[0]

    x = sample_ref[...].astype(f32)            # (B, I)
    hiddens = hiddens_ref[...].astype(f32)     # (k, B, H)
    mem_para = mem_para_ref[...].astype(f32)   # (B, H)
    hidden = hiddens[k - 1]                    # most recent hidden, (B, H)

    # Fused gate pre-activations: (B, 4H), lane-dense.
    pre = (jnp.dot(x, wx_all_ref[...], preferred_element_type=f32)
           + jnp.dot(hidden, wh_all_ref[...], preferred_element_type=f32)
           + jnp.dot(mem_para, wd_all_ref[...], preferred_element_type=f32)
           + b_all_ref[...])

    gates = jax.nn.sigmoid(pre[:, :3 * H])     # one EUP pass over 3H lanes
    update_gate = gates[:, :H]
    reset_gate = gates[:, H:2 * H]
    memory_gate = 0.5 * gates[:, 2 * H:3 * H]

    h_tilde = jnp.tanh(
        pre[:, 3 * H:]
        + jnp.dot(reset_gate * hidden, wt_h_ref[...], preferred_element_type=f32))

    # Fractional-order memory filter (get_weight_1d / mem_filter, vectorized):
    #   w[k] = 1 ; w[k-1-i] = w[k-i] * (i - d) / (i + 1),   d = memory_gate
    #   filtered = sum_t hiddens[t] * w[t],  t = 0..k-1
    w_cur = jnp.ones_like(memory_gate)
    filtered = jnp.zeros_like(memory_gate)
    for i in range(k):
        w_cur = w_cur * (f32(i) - memory_gate) / f32(i + 1)
        filtered = filtered + hiddens[k - 1 - i] * w_cur

    hidden_now = update_gate * h_tilde - filtered
    output = jnp.dot(hidden_now, wo_ref[...],
                     preferred_element_type=f32) + bo_ref[...]

    out_ref[...] = output.astype(out_ref.dtype)
    # updated_hiddens = concat([hiddens, hidden_now])[1:]  (history shift):
    # one bulk sliced store + one row store.
    if k > 1:
        upd_hiddens_ref[:k - 1] = hiddens[1:].astype(upd_hiddens_ref.dtype)
    upd_hiddens_ref[k - 1] = hidden_now.astype(upd_hiddens_ref.dtype)
    mem_gate_ref[...] = memory_gate.astype(mem_gate_ref.dtype)


def mgru_cell(sample, hiddens_all, fused, k):
    """Pallas MGRUCell forward with pre-fused weights.

    Returns (output, (updated_hiddens, memory_gate)).
    """
    B = sample.shape[0]
    H = fused["wt_h"].shape[0]
    O = fused["wo"].shape[1]
    dtype = sample.dtype

    if hiddens_all is None:
        hiddens = jnp.zeros((k, B, H), dtype)
        mem_para = jnp.zeros((B, H), dtype)
    else:
        hiddens, mem_para = hiddens_all

    vmem = pl.BlockSpec(memory_space=pltpu.MemorySpace.VMEM)
    args = (sample, hiddens, mem_para,
            fused["wx_all"], fused["wh_all"], fused["wd_all"], fused["b_all"],
            fused["wt_h"], fused["wo"], fused["bo"])

    out, upd_hiddens, mem_gate = pl.pallas_call(
        functools.partial(_mgru_kernel, k),
        out_shape=(
            jax.ShapeDtypeStruct((B, O), dtype),
            jax.ShapeDtypeStruct((k, B, H), dtype),
            jax.ShapeDtypeStruct((B, H), dtype),
        ),
        in_specs=[vmem] * len(args),
        out_specs=(vmem, vmem, vmem),
    )(*args)
    return out, (upd_hiddens, mem_gate)


if __name__ == "__main__":
    B, I, H, O, k = 2, 4, 32, 8, 3

    key = jax.random.PRNGKey(0)
    keys = jax.random.split(key, 20)

    def w(kk, shape):
        return jax.random.normal(kk, shape, jnp.float32) * 0.1

    # Deterministic synthetic parameters (shapes match the PyTorch Linears,
    # split over the concatenated inputs; stored as (in, out)).
    params = dict(
        wu_x=w(keys[0], (I, H)), wu_h=w(keys[1], (H, H)), bu=w(keys[2], (1, H)),
        wr_x=w(keys[3], (I, H)), wr_h=w(keys[4], (H, H)), br=w(keys[5], (1, H)),
        wm_x=w(keys[6], (I, H)), wm_h=w(keys[7], (H, H)),
        wm_d=w(keys[8], (H, H)), bm=w(keys[9], (1, H)),
        wt_x=w(keys[10], (I, H)), wt_h=w(keys[11], (H, H)), bt=w(keys[12], (1, H)),
        wo=w(keys[13], (H, O)), bo=w(keys[14], (1, O)),
    )
    fused = fuse_mgru_params(params)   # fuse once; reuse for every step

    sample = jax.random.normal(keys[15], (B, I), jnp.float32)
    hiddens0 = jax.random.normal(keys[16], (k, B, H), jnp.float32) * 0.5
    mem_para0 = jax.nn.sigmoid(jax.random.normal(keys[17], (B, H), jnp.float32)) * 0.5

    # Step with hiddens_all=None (zero-initialized state).
    out1, state1 = mgru_cell(sample, None, fused, k)
    # Step with an explicit (hiddens, mem_para) state.
    out2, state2 = mgru_cell(sample, (hiddens0, mem_para0), fused, k)
    jax.block_until_ready((out1, state1, out2, state2))

    # Pure-JAX reference (un-fused weights) to validate exact forward semantics.
    def ref(x, hiddens, mem_para):
        hidden = hiddens[-1]
        z = jax.nn.sigmoid(x @ params["wu_x"] + hidden @ params["wu_h"] + params["bu"])
        r = jax.nn.sigmoid(x @ params["wr_x"] + hidden @ params["wr_h"] + params["br"])
        m = 0.5 * jax.nn.sigmoid(x @ params["wm_x"] + hidden @ params["wm_h"]
                                 + mem_para @ params["wm_d"] + params["bm"])
        ht = jnp.tanh(x @ params["wt_x"] + (r * hidden) @ params["wt_h"] + params["bt"])
        wcur = jnp.ones_like(m)
        filt = jnp.zeros_like(m)
        for i in range(k):
            wcur = wcur * (i - m) / (i + 1)
            filt = filt + hiddens[k - 1 - i] * wcur
        hn = -filt + z * ht
        out = hn @ params["wo"] + params["bo"]
        upd = jnp.concatenate([hiddens[1:], hn[None]], axis=0)
        return out, upd, m

    ro, rh, rm = ref(sample, hiddens0, mem_para0)
    assert jnp.allclose(out2, ro, atol=1e-5)
    assert jnp.allclose(state2[0], rh, atol=1e-5)
    assert jnp.allclose(state2[1], rm, atol=1e-5)

    ro0, rh0, rm0 = ref(sample, jnp.zeros((k, B, H), jnp.float32),
                        jnp.zeros((B, H), jnp.float32))
    assert jnp.allclose(out1, ro0, atol=1e-5)
    assert jnp.allclose(state1[0], rh0, atol=1e-5)
    assert jnp.allclose(state1[1], rm0, atol=1e-5)

    print("KERNEL_OK")
</pallas_src>

<mosaic_0001>
module attributes {stable_mosaic.version = 11 : i64} {
  func.func @_mgru_kernel(%arg0: memref<2x4xf32, #tpu.memory_space<vmem>>, %arg1: memref<3x2x32xf32, #tpu.memory_space<vmem>>, %arg2: memref<2x32xf32, #tpu.memory_space<vmem>>, %arg3: memref<4x128xf32, #tpu.memory_space<vmem>>, %arg4: memref<32x128xf32, #tpu.memory_space<vmem>>, %arg5: memref<32x128xf32, #tpu.memory_space<vmem>>, %arg6: memref<1x128xf32, #tpu.memory_space<vmem>>, %arg7: memref<32x32xf32, #tpu.memory_space<vmem>>, %arg8: memref<32x8xf32, #tpu.memory_space<vmem>>, %arg9: memref<1x8xf32, #tpu.memory_space<vmem>>, %arg10: memref<2x8xf32, #tpu.memory_space<vmem>>, %arg11: memref<3x2x32xf32, #tpu.memory_space<vmem>>, %arg12: memref<2x32xf32, #tpu.memory_space<vmem>>) attributes {dimension_semantics = [], scalar_prefetch = 0 : i64, scratch_operands = 0 : i64, tpu.core_type = #tpu.core_type<tc>} {
    %c0 = arith.constant 0 : index
    %c0_0 = arith.constant 0 : index
    %0 = vector.load %arg0[%c0, %c0_0] : memref<2x4xf32, #tpu.memory_space<vmem>>, vector<2x4xf32>
    %c0_1 = arith.constant 0 : index
    %c0_2 = arith.constant 0 : index
    %c0_3 = arith.constant 0 : index
    %1 = vector.load %arg1[%c0_1, %c0_2, %c0_3] : memref<3x2x32xf32, #tpu.memory_space<vmem>>, vector<3x2x32xf32>
    %c0_4 = arith.constant 0 : index
    %c0_5 = arith.constant 0 : index
    %2 = vector.load %arg2[%c0_4, %c0_5] : memref<2x32xf32, #tpu.memory_space<vmem>>, vector<2x32xf32>
    %3 = vector.extract_strided_slice %1 {offsets = [2, 0, 0], sizes = [1, 2, 32], strides = [1, 1, 1]} : vector<3x2x32xf32> to vector<1x2x32xf32>
    %4 = vector.shape_cast %3 : vector<1x2x32xf32> to vector<2x32xf32>
    %c0_6 = arith.constant 0 : index
    %c0_7 = arith.constant 0 : index
    %5 = vector.load %arg3[%c0_6, %c0_7] : memref<4x128xf32, #tpu.memory_space<vmem>>, vector<4x128xf32>
    %cst = arith.constant dense<0.000000e+00> : vector<2x128xf32>
    %6 = tpu.matmul %0, %5, %cst {dimension_numbers = #tpu.dot_dimension_numbers<[1], [0], [0], [1], [0, 0, 1, 1], [], []>} : vector<2x4xf32>, vector<4x128xf32>, vector<2x128xf32> -> vector<2x128xf32>
    %c0_8 = arith.constant 0 : index
    %c0_9 = arith.constant 0 : index
    %7 = vector.load %arg4[%c0_8, %c0_9] : memref<32x128xf32, #tpu.memory_space<vmem>>, vector<32x128xf32>
    %cst_10 = arith.constant dense<0.000000e+00> : vector<2x128xf32>
    %8 = tpu.matmul %4, %7, %cst_10 {dimension_numbers = #tpu.dot_dimension_numbers<[1], [0], [0], [1], [0, 0, 1, 1], [], []>} : vector<2x32xf32>, vector<32x128xf32>, vector<2x128xf32> -> vector<2x128xf32>
    %9 = arith.addf %6, %8 : vector<2x128xf32>
    %c0_11 = arith.constant 0 : index
    %c0_12 = arith.constant 0 : index
    %10 = vector.load %arg5[%c0_11, %c0_12] : memref<32x128xf32, #tpu.memory_space<vmem>>, vector<32x128xf32>
    %cst_13 = arith.constant dense<0.000000e+00> : vector<2x128xf32>
    %11 = tpu.matmul %2, %10, %cst_13 {dimension_numbers = #tpu.dot_dimension_numbers<[1], [0], [0], [1], [0, 0, 1, 1], [], []>} : vector<2x32xf32>, vector<32x128xf32>, vector<2x128xf32> -> vector<2x128xf32>
    %12 = arith.addf %9, %11 : vector<2x128xf32>
    %c0_14 = arith.constant 0 : index
    %c0_15 = arith.constant 0 : index
    %13 = vector.load %arg6[%c0_14, %c0_15] : memref<1x128xf32, #tpu.memory_space<vmem>>, vector<1x128xf32>
    %14 = vector.broadcast %13 : vector<1x128xf32> to vector<2x128xf32>
    %15 = arith.addf %12, %14 : vector<2x128xf32>
    %16 = vector.extract_strided_slice %15 {offsets = [0, 0], sizes = [2, 96], strides = [1, 1]} : vector<2x128xf32> to vector<2x96xf32>
    %17 = arith.negf %16 : vector<2x96xf32>
    %18 = math.exp %17 : vector<2x96xf32>
    %cst_16 = arith.constant 1.000000e+00 : f32
    %19 = vector.broadcast %cst_16 : f32 to vector<2x96xf32>
    %20 = arith.addf %19, %18 : vector<2x96xf32>
    %21 = arith.divf %19, %20 : vector<2x96xf32>
    %22 = vector.extract_strided_slice %21 {offsets = [0, 0], sizes = [2, 32], strides = [1, 1]} : vector<2x96xf32> to vector<2x32xf32>
    %23 = vector.extract_strided_slice %21 {offsets = [0, 32], sizes = [2, 32], strides = [1, 1]} : vector<2x96xf32> to vector<2x32xf32>
    %24 = vector.extract_strided_slice %21 {offsets = [0, 64], sizes = [2, 32], strides = [1, 1]} : vector<2x96xf32> to vector<2x32xf32>
    %cst_17 = arith.constant 5.000000e-01 : f32
    %25 = vector.broadcast %cst_17 : f32 to vector<2x32xf32>
    %26 = arith.mulf %25, %24 : vector<2x32xf32>
    %27 = vector.extract_strided_slice %15 {offsets = [0, 96], sizes = [2, 32], strides = [1, 1]} : vector<2x128xf32> to vector<2x32xf32>
    %28 = arith.mulf %23, %4 : vector<2x32xf32>
    %c0_18 = arith.constant 0 : index
    %c0_19 = arith.constant 0 : index
    %29 = vector.load %arg7[%c0_18, %c0_19] : memref<32x32xf32, #tpu.memory_space<vmem>>, vector<32x32xf32>
    %cst_20 = arith.constant dense<0.000000e+00> : vector<2x32xf32>
    %30 = tpu.matmul %28, %29, %cst_20 {dimension_numbers = #tpu.dot_dimension_numbers<[1], [0], [0], [1], [0, 0, 1, 1], [], []>} : vector<2x32xf32>, vector<32x32xf32>, vector<2x32xf32> -> vector<2x32xf32>
    %31 = arith.addf %27, %30 : vector<2x32xf32>
    %32 = math.tanh %31 : vector<2x32xf32>
    %cst_21 = arith.constant 1.000000e+00 : f32
    %33 = vector.broadcast %cst_21 : f32 to vector<2x32xf32>
    %cst_22 = arith.constant 0.000000e+00 : f32
    %34 = vector.broadcast %cst_22 : f32 to vector<2x32xf32>
    %cst_23 = arith.constant 0.000000e+00 : f32
    %35 = vector.broadcast %cst_23 : f32 to vector<2x32xf32>
    %36 = arith.subf %35, %26 : vector<2x32xf32>
    %37 = arith.mulf %33, %36 : vector<2x32xf32>
    %cst_24 = arith.constant 1.000000e+00 : f32
    %38 = vector.broadcast %cst_24 : f32 to vector<2x32xf32>
    %39 = arith.divf %37, %38 : vector<2x32xf32>
    %40 = vector.extract_strided_slice %1 {offsets = [2, 0, 0], sizes = [1, 2, 32], strides = [1, 1, 1]} : vector<3x2x32xf32> to vector<1x2x32xf32>
    %41 = vector.shape_cast %40 : vector<1x2x32xf32> to vector<2x32xf32>
    %42 = arith.mulf %41, %39 : vector<2x32xf32>
    %43 = arith.addf %34, %42 : vector<2x32xf32>
    %cst_25 = arith.constant 1.000000e+00 : f32
    %44 = vector.broadcast %cst_25 : f32 to vector<2x32xf32>
    %45 = arith.subf %44, %26 : vector<2x32xf32>
    %46 = arith.mulf %39, %45 : vector<2x32xf32>
    %cst_26 = arith.constant 2.000000e+00 : f32
    %47 = vector.broadcast %cst_26 : f32 to vector<2x32xf32>
    %48 = arith.divf %46, %47 : vector<2x32xf32>
    %49 = vector.extract_strided_slice %1 {offsets = [1, 0, 0], sizes = [1, 2, 32], strides = [1, 1, 1]} : vector<3x2x32xf32> to vector<1x2x32xf32>
    %50 = vector.shape_cast %49 : vector<1x2x32xf32> to vector<2x32xf32>
    %51 = arith.mulf %50, %48 : vector<2x32xf32>
    %52 = arith.addf %43, %51 : vector<2x32xf32>
    %cst_27 = arith.constant 2.000000e+00 : f32
    %53 = vector.broadcast %cst_27 : f32 to vector<2x32xf32>
    %54 = arith.subf %53, %26 : vector<2x32xf32>
    %55 = arith.mulf %48, %54 : vector<2x32xf32>
    %cst_28 = arith.constant 3.000000e+00 : f32
    %56 = vector.broadcast %cst_28 : f32 to vector<2x32xf32>
    %57 = arith.divf %55, %56 : vector<2x32xf32>
    %58 = vector.extract_strided_slice %1 {offsets = [0, 0, 0], sizes = [1, 2, 32], strides = [1, 1, 1]} : vector<3x2x32xf32> to vector<1x2x32xf32>
    %59 = vector.shape_cast %58 : vector<1x2x32xf32> to vector<2x32xf32>
    %60 = arith.mulf %59, %57 : vector<2x32xf32>
    %61 = arith.addf %52, %60 : vector<2x32xf32>
    %62 = arith.mulf %22, %32 : vector<2x32xf32>
    %63 = arith.subf %62, %61 : vector<2x32xf32>
    %c0_29 = arith.constant 0 : index
    %c0_30 = arith.constant 0 : index
    %64 = vector.load %arg8[%c0_29, %c0_30] : memref<32x8xf32, #tpu.memory_space<vmem>>, vector<32x8xf32>
    %cst_31 = arith.constant dense<0.000000e+00> : vector<2x8xf32>
    %65 = tpu.matmul %63, %64, %cst_31 {dimension_numbers = #tpu.dot_dimension_numbers<[1], [0], [0], [1], [0, 0, 1, 1], [], []>} : vector<2x32xf32>, vector<32x8xf32>, vector<2x8xf32> -> vector<2x8xf32>
    %c0_32 = arith.constant 0 : index
    %c0_33 = arith.constant 0 : index
    %66 = vector.load %arg9[%c0_32, %c0_33] : memref<1x8xf32, #tpu.memory_space<vmem>>, vector<1x8xf32>
    %67 = vector.broadcast %66 : vector<1x8xf32> to vector<2x8xf32>
    %68 = arith.addf %65, %67 : vector<2x8xf32>
    %c0_34 = arith.constant 0 : index
    %c0_35 = arith.constant 0 : index
    %69 = vector.load %arg10[%c0_34, %c0_35] : memref<2x8xf32, #tpu.memory_space<vmem>>, vector<2x8xf32>
    tpu.vector_store %arg10[%c0_34, %c0_35], %68 {strides = array<i32>} : memref<2x8xf32, #tpu.memory_space<vmem>>, vector<2x8xf32>,
    %70 = vector.extract_strided_slice %1 {offsets = [1, 0, 0], sizes = [2, 2, 32], strides = [1, 1, 1]} : vector<3x2x32xf32> to vector<2x2x32xf32>
    %c0_36 = arith.constant 0 : index
    %c0_37 = arith.constant 0 : index
    %c0_38 = arith.constant 0 : index
    %71 = vector.load %arg11[%c0_36, %c0_37, %c0_38] : memref<3x2x32xf32, #tpu.memory_space<vmem>>, vector<2x2x32xf32>
    tpu.vector_store %arg11[%c0_36, %c0_37, %c0_38], %70 {strides = array<i32>} : memref<3x2x32xf32, #tpu.memory_space<vmem>>, vector<2x2x32xf32>,
    %c2 = arith.constant 2 : index
    %c0_39 = arith.constant 0 : index
    %c0_40 = arith.constant 0 : index
    %72 = vector.load %arg11[%c2, %c0_39, %c0_40] : memref<3x2x32xf32, #tpu.memory_space<vmem>>, vector<1x2x32xf32>
    %73 = vector.shape_cast %72 : vector<1x2x32xf32> to vector<2x32xf32>
    %74 = vector.shape_cast %63 : vector<2x32xf32> to vector<1x2x32xf32>
    tpu.vector_store %arg11[%c2, %c0_39, %c0_40], %74 {strides = array<i32>} : memref<3x2x32xf32, #tpu.memory_space<vmem>>, vector<1x2x32xf32>,
    %c0_41 = arith.constant 0 : index
    %c0_42 = arith.constant 0 : index
    %75 = vector.load %arg12[%c0_41, %c0_42] : memref<2x32xf32, #tpu.memory_space<vmem>>, vector<2x32xf32>
    tpu.vector_store %arg12[%c0_41, %c0_42], %26 {strides = array<i32>} : memref<2x32xf32, #tpu.memory_space<vmem>>, vector<2x32xf32>,
    return
  }
}

</mosaic_0001>

<llo_original>
// kernel: tpu_custom_call.1
$region0: #{tpu_custom_call.1}
  #allocation0 [shape = 'u32[]', space=smem, size = 0x4, offset = 0x4, fixed_abs, tag = 'smem constant byte address 0x4 - core index']
  #allocation1 [shape = 'u32[144,128]{1,0:T(1,128)}', space=vmem, size = 0x12000, scoped, tag = 'internal scratch']
  %s0 = inlined_call_operand.vmem [shape: f32[2,4], index: 0, kind: input, shape index: {}]
  %s1 = inlined_call_operand.vmem [shape: f32[3,2,32], index: 1, kind: input, shape index: {}]
  %s2 = inlined_call_operand.vmem [shape: f32[2,32], index: 2, kind: input, shape index: {}]
  %s3 = inlined_call_operand.vmem [shape: f32[4,128], index: 3, kind: input, shape index: {}]
  %s4 = inlined_call_operand.vmem [shape: f32[32,128], index: 4, kind: input, shape index: {}]
  %s5 = inlined_call_operand.hbm [shape: f32[32,128], index: 5, kind: input, shape index: {}]
  %s6 = inlined_call_operand.hbm [shape: f32[1,128], index: 6, kind: input, shape index: {}]
  %s7 = inlined_call_operand.hbm [shape: f32[32,32], index: 7, kind: input, shape index: {}]
  %s8 = inlined_call_operand.vmem [shape: f32[32,8], index: 8, kind: input, shape index: {}]
  %s9 = inlined_call_operand.vmem [shape: f32[1,8], index: 9, kind: input, shape index: {}]
  %s10 = inlined_call_operand.hbm [shape: f32[2,8], index: 10, kind: output, shape index: {0}]
  %s11 = inlined_call_operand.hbm [shape: f32[3,2,32], index: 11, kind: output, shape index: {1}]
  %s12 = inlined_call_operand.hbm [shape: f32[2,32], index: 12, kind: output, shape index: {2}]
  %13 = xla_tuple %s10, %s11, %s12
  %s14 = sld [smem:[#allocation0]]
  $region78: #{tpu_custom_call.1} parent=0
    _
  %s16 = ssub.s32 1, %s14
  %s17 = scalar_select 0, %s16, %s14
  $region1: #{tpu_custom_call.1} parent=0
    #allocation2 [shape = 'u8[16384]{0}', space=vmem, size = 0x4000, scoped, tag = 'input window, operand 5, single buffered']
    #allocation3 [shape = 's32[1]{0}', space=sflag, size = 0x4, scoped, tag = 'scoped memory for tpu_custom_call.1']
    #allocation4 [shape = 's32[1]{0}', space=sflag, size = 0x4, scoped, tag = 'scoped memory for tpu_custom_call.1']
    #allocation5 [shape = 'u8[512]{0}', space=vmem, size = 0x400, scoped, tag = 'input window, operand 6, single buffered']
    #allocation6 [shape = 's32[1]{0}', space=sflag, size = 0x4, scoped, tag = 'scoped memory for tpu_custom_call.1']
    #allocation7 [shape = 'u8[16384]{0}', space=vmem, size = 0x4000, scoped, tag = 'input window, operand 7, single buffered']
    #allocation8 [shape = 'u8[1024]{0}', space=vmem, size = 0x400, scoped, tag = 'output window, operand 0, single buffered']
    #allocation9 [shape = 'u8[3072]{0}', space=vmem, size = 0xc00, scoped, tag = 'output window, operand 1, single buffered']
    #allocation10 [shape = 's32[1]{0}', space=sflag, size = 0x4, scoped, tag = 'scoped memory for tpu_custom_call.1']
    #allocation11 [shape = 'u8[1024]{0}', space=vmem, size = 0x400, scoped, tag = 'output window, operand 2, single buffered']
    %18 = vsyncpa [#allocation3], 0
    %19 = vsyncpa [#allocation6], 0
    %20 = vsyncpa [#allocation4], 0
    %21 = vsyncpa [#allocation10], 0
    // Predicated region
    $region2: #{tpu_custom_call.1} parent=1 // pred_check
      _
    $region3: #{tpu_custom_call.1} parent=1 // pred_check_branch
      %23 = sbr.rel (0) target = $region5
    $region4: #{tpu_custom_call.1} parent=1 // pred_region
      _
    $region5: #{tpu_custom_call.1} parent=1 // pred_fallthru
      _
    // Predicated region
    $region6: #{tpu_custom_call.1} parent=1 // pred_check
      _
    $region7: #{tpu_custom_call.1} parent=1 // pred_check_branch
      %25 = sbr.rel (0) target = $region9
    $region8: #{tpu_custom_call.1} parent=1 // pred_region
      _
    $region9: #{tpu_custom_call.1} parent=1 // pred_fallthru
      _
    // Predicated region
    $region10: #{tpu_custom_call.1} parent=1 // pred_check
      _
    $region11: #{tpu_custom_call.1} parent=1 // pred_check_branch
      %27 = sbr.rel (0) target = $region13
    $region12: #{tpu_custom_call.1} parent=1 // pred_region
      _
    $region13: #{tpu_custom_call.1} parent=1 // pred_fallthru
      _
    // Predicated region
    $region14: #{tpu_custom_call.1} parent=1 // pred_check
      _
    $region15: #{tpu_custom_call.1} parent=1 // pred_check_branch
      %29 = sbr.rel (0) target = $region17
    $region16: #{tpu_custom_call.1} parent=1 // pred_region
      _
    $region17: #{tpu_custom_call.1} parent=1 // pred_fallthru
      _
    // Predicated region
    $region18: #{tpu_custom_call.1} parent=1 // pred_check
      _
    $region19: #{tpu_custom_call.1} parent=1 // pred_check_branch
      %31 = sbr.rel (0) target = $region21
    $region20: #{tpu_custom_call.1} parent=1 // pred_region
      _
    $region21: #{tpu_custom_call.1} parent=1 // pred_fallthru
      _
    // Predicated region
    $region22: #{tpu_custom_call.1} parent=1 // pred_check
      _
    $region23: #{tpu_custom_call.1} parent=1 // pred_check_branch
      %33 = sbr.rel (0) target = $region25
    $region24: #{tpu_custom_call.1} parent=1 // pred_region
      %s35 = ssub.s32 512, 512
      %36 = vsyncadd [#allocation3], %s35
      %s37 = sshll.u32 [#allocation2], 4
      %s38 = int_to_ptr.vmem [resolvable:$true] %s37
      %43 = dma.hbm_to_vmem [thread:$0]  %s5, 512, %s38, [#allocation3], 128, 128, 8
    $region25: #{tpu_custom_call.1} parent=1 // pred_fallthru
      _
    // Predicated region
    $region26: #{tpu_custom_call.1} parent=1 // pred_check
      _
    $region27: #{tpu_custom_call.1} parent=1 // pred_check_branch
      %45 = sbr.rel (0) target = $region29
    $region28: #{tpu_custom_call.1} parent=1 // pred_region
      %s47 = ssub.s32 16, 16
      %48 = vsyncadd [#allocation6], %s47
      %s50 = sshll.u32 [#allocation5], 4
      %s51 = int_to_ptr.vmem [resolvable:$true] %s50
      %53 = dma.hbm_to_vmem [thread:$0]  %s6, 16, %s51, [#allocation6]
    $region29: #{tpu_custom_call.1} parent=1 // pred_fallthru
      _
    // Predicated region
    $region30: #{tpu_custom_call.1} parent=1 // pred_check
      _
    $region31: #{tpu_custom_call.1} parent=1 // pred_check_branch
      %55 = sbr.rel (0) target = $region33
    $region32: #{tpu_custom_call.1} parent=1 // pred_region
      %s57 = ssub.s32 512, 512
      %58 = vsyncadd [#allocation6], %s57
      %s59 = sshll.u32 [#allocation7], 4
      %s60 = int_to_ptr.vmem [resolvable:$true] %s59
      %65 = dma.hbm_to_vmem [thread:$0]  %s7, 512, %s60, [#allocation6], 128, 128, 8
    $region33: #{tpu_custom_call.1} parent=1 // pred_fallthru
      _
    // Predicated region
    $region34: #{tpu_custom_call.1} parent=1 // pred_check
      _
    $region35: #{tpu_custom_call.1} parent=1 // pred_check_branch
      %67 = sbr.rel (0) target = $region37
    $region36: #{tpu_custom_call.1} parent=1 // pred_region
      _
    $region37: #{tpu_custom_call.1} parent=1 // pred_fallthru
      _
    // Predicated region
    $region38: #{tpu_custom_call.1} parent=1 // pred_check
      _
    $region39: #{tpu_custom_call.1} parent=1 // pred_check_branch
      %69 = sbr.rel (0) target = $region41
    $region40: #{tpu_custom_call.1} parent=1 // pred_region
      _
    $region41: #{tpu_custom_call.1} parent=1 // pred_fallthru
      _
    // Predicated region
    $region42: #{tpu_custom_call.1} parent=1 // pred_check
      _
    $region43: #{tpu_custom_call.1} parent=1 // pred_check_branch
      %71 = sbr.rel (0) target = $region45
    $region44: #{tpu_custom_call.1} parent=1 // pred_region
      %72 = dma.done [#allocation3], 512
    $region45: #{tpu_custom_call.1} parent=1 // pred_fallthru
      _
    // Predicated region
    $region46: #{tpu_custom_call.1} parent=1 // pred_check
      _
    $region47: #{tpu_custom_call.1} parent=1 // pred_check_branch
      %74 = sbr.rel (0) target = $region49
    $region48: #{tpu_custom_call.1} parent=1 // pred_region
      %75 = dma.done [#allocation6], 16
    $region49: #{tpu_custom_call.1} parent=1 // pred_fallthru
      _
    // Predicated region
    $region50: #{tpu_custom_call.1} parent=1 // pred_check
      _
    $region51: #{tpu_custom_call.1} parent=1 // pred_check_branch
      %77 = sbr.rel (0) target = $region53
    $region52: #{tpu_custom_call.1} parent=1 // pred_region
      %78 = dma.done [#allocation6], 512
    $region53: #{tpu_custom_call.1} parent=1 // pred_fallthru
      _
    %v79 = vld [vmem:[%s0] sm:$0x3]
    %v80 = vld [vmem:[%s1] sm:$0x3]
    %v81 = vld [vmem:[%s1 + $0x2] sm:$0x3]
    %v82 = vld [vmem:[%s1 + $0x4] sm:$0x3]
    %v83 = vld [vmem:[%s2] sm:$0x3]
    %v84 = vld [vmem:[%s3] sm:$0xf]
    %v85 = vld [vmem:[%s4] sm:$0xff]
    %v86 = vld [vmem:[%s4 + $0x8] sm:$0xff]
    %v87 = vld [vmem:[%s4 + $0x10] sm:$0xff]
    %v88 = vld [vmem:[%s4 + $0x18] sm:$0xff]
    %vm89 = vcmask 261120
    %v91 = vsel %vm89, %v82, 0
    %93 = vmatprep.subr.mxu0 0.0
    %94 = vmatpush1.msra.mxu0 0.0
    %95 = vmatprep.subr.mxu0 0.0
    %96 = vmatpush1.msra.mxu0 0.0
    %97 = vmatprep.subr.mxu0 0.0
    %98 = vmatpush1.msra.mxu0 0.0
    %99 = vmatprep.subr.mxu0 0.0
    %100 = vmatpush1.msra.mxu0 0.0
    %101 = vmatprep.subr.mxu0 0.0
    %102 = vmatpush1.msra.mxu0 0.0
    %103 = vmatprep.subr.mxu0 0.0
    %104 = vmatpush1.msra.mxu0 0.0
    %105 = vmatprep.subr.mxu0 0.0
    %106 = vmatpush1.msra.mxu0 0.0
    %107 = vmatprep.subr.mxu0 0.0
    %108 = vmatpush1.msra.mxu0 0.0
    %109 = vmatprep.subr.mxu0 0.0
    %110 = vmatpush1.msra.mxu0 0.0
    %111 = vmatprep.subr.mxu0 0.0
    %112 = vmatpush1.msra.mxu0 0.0
    %113 = vmatprep.subr.mxu0 0.0
    %114 = vmatpush1.msra.mxu0 0.0
    %115 = vmatprep.subr.mxu0 0.0
    %116 = vmatpush1.msra.mxu0 0.0
    %117 = vmatprep.subr.mxu0 0.0
    %118 = vmatpush1.msra.mxu0 %v88
    %119 = vmatprep.subr.mxu0 0.0
    %120 = vmatpush1.msra.mxu0 %v87
    %121 = vmatprep.subr.mxu0 0.0
    %122 = vmatpush1.msra.mxu0 %v86
    %123 = vmatprep.subr.mxu0 0.0
    %124 = vmatpush1.msra.mxu0 %v85
    %125 = vmatprep.subr.mxu0 0.0
    %126 = vmatpush2.msra.mxu0 0.0
    %127 = vmatprep.subr.mxu0 0.0
    %128 = vmatpush2.msra.mxu0 0.0
    %129 = vmatprep.subr.mxu0 0.0
    %130 = vmatpush2.msra.mxu0 0.0
    %131 = vmatprep.subr.mxu0 0.0
    %132 = vmatpush2.msra.mxu0 0.0
    %133 = vmatprep.subr.mxu0 0.0
    %134 = vmatpush2.msra.mxu0 0.0
    %135 = vmatprep.subr.mxu0 0.0
    %136 = vmatpush2.msra.mxu0 0.0
    %137 = vmatprep.subr.mxu0 0.0
    %138 = vmatpush2.msra.mxu0 0.0
    %139 = vmatprep.subr.mxu0 0.0
    %140 = vmatpush2.msra.mxu0 0.0
    %141 = vmatprep.subr.mxu0 0.0
    %142 = vmatpush2.msra.mxu0 0.0
    %143 = vmatprep.subr.mxu0 0.0
    %144 = vmatpush2.msra.mxu0 0.0
    %145 = vmatprep.subr.mxu0 0.0
    %146 = vmatpush2.msra.mxu0 0.0
    %147 = vmatprep.subr.mxu0 0.0
    %148 = vmatpush2.msra.mxu0 0.0
    %149 = vmatprep.subr.mxu0 0.0
    %150 = vmatpush2.msra.mxu0 0.0
    %151 = vmatprep.subr.mxu0 0.0
    %152 = vmatpush2.msra.mxu0 0.0
    %153 = vmatprep.subr.mxu0 0.0
    %154 = vmatpush2.msra.mxu0 0.0
    %155 = vmatprep.subr.mxu0 0.0
    %156 = vmatpush2.msra.mxu0 0.0
    %157 = vmatprep.mubr.f32.mxu0 0.0
    %158 = vmatmul.mubr.f32.gmra.mxu0 %v91
    %v159 = vpop.f32.mrf.mxu0
    %v160 = vadd.f32 0.0, %v159
    %v161 = vpop.f32.mrf.mxu0
    %162 = vdwg.mxu0
    %vm163 = vcmask 31744
    %v165 = vsel %vm163, %v79, 0
    %vm167 = vcmask 1043456
    %v169 = vsel %vm167, %v84, 0
    %171 = vmatprep.subr.mxu0 0.0
    %172 = vmatpush1.msra.mxu0 0.0
    %173 = vmatprep.subr.mxu0 0.0
    %174 = vmatpush1.msra.mxu0 0.0
    %175 = vmatprep.subr.mxu0 0.0
    %176 = vmatpush1.msra.mxu0 0.0
    %177 = vmatprep.subr.mxu0 0.0
    %178 = vmatpush1.msra.mxu0 0.0
    %179 = vmatprep.subr.mxu0 0.0
    %180 = vmatpush1.msra.mxu0 0.0
    %181 = vmatprep.subr.mxu0 0.0
    %182 = vmatpush1.msra.mxu0 0.0
    %183 = vmatprep.subr.mxu0 0.0
    %184 = vmatpush1.msra.mxu0 0.0
    %185 = vmatprep.subr.mxu0 0.0
    %186 = vmatpush1.msra.mxu0 0.0
    %187 = vmatprep.subr.mxu0 0.0
    %188 = vmatpush1.msra.mxu0 0.0
    %189 = vmatprep.subr.mxu0 0.0
    %190 = vmatpush1.msra.mxu0 0.0
    %191 = vmatprep.subr.mxu0 0.0
    %192 = vmatpush1.msra.mxu0 0.0
    %193 = vmatprep.subr.mxu0 0.0
    %194 = vmatpush1.msra.mxu0 0.0
    %195 = vmatprep.subr.mxu0 0.0
    %196 = vmatpush1.msra.mxu0 0.0
    %197 = vmatprep.subr.mxu0 0.0
    %198 = vmatpush1.msra.mxu0 0.0
    %199 = vmatprep.subr.mxu0 0.0
    %200 = vmatpush1.msra.mxu0 0.0
    %201 = vmatprep.subr.mxu0 0.0
    %202 = vmatpush1.msra.mxu0 %v169
    %203 = vmatprep.subr.mxu0 0.0
    %204 = vmatpush2.msra.mxu0 0.0
    %205 = vmatprep.subr.mxu0 0.0
    %206 = vmatpush2.msra.mxu0 0.0
    %207 = vmatprep.subr.mxu0 0.0
    %208 = vmatpush2.msra.mxu0 0.0
    %209 = vmatprep.subr.mxu0 0.0
    %210 = vmatpush2.msra.mxu0 0.0
    %211 = vmatprep.subr.mxu0 0.0
    %212 = vmatpush2.msra.mxu0 0.0
    %213 = vmatprep.subr.mxu0 0.0
    %214 = vmatpush2.msra.mxu0 0.0
    %215 = vmatprep.subr.mxu0 0.0
    %216 = vmatpush2.msra.mxu0 0.0
    %217 = vmatprep.subr.mxu0 0.0
    %218 = vmatpush2.msra.mxu0 0.0
    %219 = vmatprep.subr.mxu0 0.0
    %220 = vmatpush2.msra.mxu0 0.0
    %221 = vmatprep.subr.mxu0 0.0
    %222 = vmatpush2.msra.mxu0 0.0
    %223 = vmatprep.subr.mxu0 0.0
    %224 = vmatpush2.msra.mxu0 0.0
    %225 = vmatprep.subr.mxu0 0.0
    %226 = vmatpush2.msra.mxu0 0.0
    %227 = vmatprep.subr.mxu0 0.0
    %228 = vmatpush2.msra.mxu0 0.0
    %229 = vmatprep.subr.mxu0 0.0
    %230 = vmatpush2.msra.mxu0 0.0
    %231 = vmatprep.subr.mxu0 0.0
    %232 = vmatpush2.msra.mxu0 0.0
    %233 = vmatprep.subr.mxu0 0.0
    %234 = vmatpush2.msra.mxu0 0.0
    %235 = vmatprep.mubr.f32.mxu0 0.0
    %236 = vmatmul.mubr.f32.gmra.mxu0 %v165
    %v237 = vpop.f32.mrf.mxu0
    %v238 = vadd.f32 %v160, %v237
    %v239 = vpop.f32.mrf.mxu0
    %240 = vdwg.mxu0
    %v241 = vld [vmem:[#allocation2] sm:$0xff]
    %v242 = vld [vmem:[#allocation2 + $0x8] sm:$0xff]
    %v243 = vld [vmem:[#allocation2 + $0x10] sm:$0xff]
    %v244 = vld [vmem:[#allocation2 + $0x18] sm:$0xff]
    %v246 = vsel %vm89, %v83, 0
    %248 = vmatprep.subr.mxu0 0.0
    %249 = vmatpush1.msra.mxu0 0.0
    %250 = vmatprep.subr.mxu0 0.0
    %251 = vmatpush1.msra.mxu0 0.0
    %252 = vmatprep.subr.mxu0 0.0
    %253 = vmatpush1.msra.mxu0 0.0
    %254 = vmatprep.subr.mxu0 0.0
    %255 = vmatpush1.msra.mxu0 0.0
    %256 = vmatprep.subr.mxu0 0.0
    %257 = vmatpush1.msra.mxu0 0.0
    %258 = vmatprep.subr.mxu0 0.0
    %259 = vmatpush1.msra.mxu0 0.0
    %260 = vmatprep.subr.mxu0 0.0
    %261 = vmatpush1.msra.mxu0 0.0
    %262 = vmatprep.subr.mxu0 0.0
    %263 = vmatpush1.msra.mxu0 0.0
    %264 = vmatprep.subr.mxu0 0.0
    %265 = vmatpush1.msra.mxu0 0.0
    %266 = vmatprep.subr.mxu0 0.0
    %267 = vmatpush1.msra.mxu0 0.0
    %268 = vmatprep.subr.mxu0 0.0
    %269 = vmatpush1.msra.mxu0 0.0
    %270 = vmatprep.subr.mxu0 0.0
    %271 = vmatpush1.msra.mxu0 0.0
    %272 = vmatprep.subr.mxu0 0.0
    %273 = vmatpush1.msra.mxu0 %v244
    %274 = vmatprep.subr.mxu0 0.0
    %275 = vmatpush1.msra.mxu0 %v243
    %276 = vmatprep.subr.mxu0 0.0
    %277 = vmatpush1.msra.mxu0 %v242
    %278 = vmatprep.subr.mxu0 0.0
    %279 = vmatpush1.msra.mxu0 %v241
    %280 = vmatprep.subr.mxu0 0.0
    %281 = vmatpush2.msra.mxu0 0.0
    %282 = vmatprep.subr.mxu0 0.0
    %283 = vmatpush2.msra.mxu0 0.0
    %284 = vmatprep.subr.mxu0 0.0
    %285 = vmatpush2.msra.mxu0 0.0
    %286 = vmatprep.subr.mxu0 0.0
    %287 = vmatpush2.msra.mxu0 0.0
    %288 = vmatprep.subr.mxu0 0.0
    %289 = vmatpush2.msra.mxu0 0.0
    %290 = vmatprep.subr.mxu0 0.0
    %291 = vmatpush2.msra.mxu0 0.0
    %292 = vmatprep.subr.mxu0 0.0
    %293 = vmatpush2.msra.mxu0 0.0
    %294 = vmatprep.subr.mxu0 0.0
    %295 = vmatpush2.msra.mxu0 0.0
    %296 = vmatprep.subr.mxu0 0.0
    %297 = vmatpush2.msra.mxu0 0.0
    %298 = vmatprep.subr.mxu0 0.0
    %299 = vmatpush2.msra.mxu0 0.0
    %300 = vmatprep.subr.mxu0 0.0
    %301 = vmatpush2.msra.mxu0 0.0
    %302 = vmatprep.subr.mxu0 0.0
    %303 = vmatpush2.msra.mxu0 0.0
    %304 = vmatprep.subr.mxu0 0.0
    %305 = vmatpush2.msra.mxu0 0.0
    %306 = vmatprep.subr.mxu0 0.0
    %307 = vmatpush2.msra.mxu0 0.0
    %308 = vmatprep.subr.mxu0 0.0
    %309 = vmatpush2.msra.mxu0 0.0
    %310 = vmatprep.subr.mxu0 0.0
    %311 = vmatpush2.msra.mxu0 0.0
    %312 = vmatprep.mubr.f32.mxu0 0.0
    %313 = vmatmul.mubr.f32.gmra.mxu0 %v246
    %v314 = vpop.f32.mrf.mxu0
    %v315 = vadd.f32 0.0, %v314
    %v316 = vpop.f32.mrf.mxu0
    %317 = vdwg.mxu0
    %v318 = vadd.f32 %v238, %v315
    %v319 = vld [vmem:[#allocation5] sm:$0x1]
    %v321 = vlaneseq
    %v322 = vshrl.u32 %v321, 7
    %v323 = vsub.s32 0, %v322
    %v324 = vrot.slane %v319, %v323
    %v326 = vadd.f32 %v318, %v324
    %v327 = vxor.u32 %v326, 2147483648
    %v328 = vmul.f32 %v327, 1.442695
    %v329 = vpow.pop %v328
    %v330 = vadd.f32 %v329, 1.0
    %v331 = vrcp.pop %v330
    %v332 = vmul.f32 1.0, %v331
    %v333 = vmul.f32 %v332, 0.5
    %334 = vrot.lane.b32.xlu0 %v82, 32
    %v335 = vpop.permute.xlu0 %334
    %v337 = vmul.f32 %v332, %v335
    %v338 = vld [vmem:[#allocation7] sm:$0xff]
    %v339 = vld [vmem:[#allocation7 + $0x8] sm:$0xff]
    %v340 = vld [vmem:[#allocation7 + $0x10] sm:$0xff]
    %v341 = vld [vmem:[#allocation7 + $0x18] sm:$0xff]
    %343 = vrot.lane.b32.xlu0 %v337, 96
    %v344 = vpop.permute.xlu0 %343
    %v345 = vsel %vm89, %v344, 0
    %347 = vmatprep.subr.mxu0 0.0
    %348 = vmatpush1.msra.mxu0 0.0
    %349 = vmatprep.subr.mxu0 0.0
    %350 = vmatpush1.msra.mxu0 0.0
    %351 = vmatprep.subr.mxu0 0.0
    %352 = vmatpush1.msra.mxu0 0.0
    %353 = vmatprep.subr.mxu0 0.0
    %354 = vmatpush1.msra.mxu0 0.0
    %355 = vmatprep.subr.mxu0 0.0
    %356 = vmatpush1.msra.mxu0 0.0
    %357 = vmatprep.subr.mxu0 0.0
    %358 = vmatpush1.msra.mxu0 0.0
    %359 = vmatprep.subr.mxu0 0.0
    %360 = vmatpush1.msra.mxu0 0.0
    %361 = vmatprep.subr.mxu0 0.0
    %362 = vmatpush1.msra.mxu0 0.0
    %363 = vmatprep.subr.mxu0 0.0
    %364 = vmatpush1.msra.mxu0 0.0
    %365 = vmatprep.subr.mxu0 0.0
    %366 = vmatpush1.msra.mxu0 0.0
    %367 = vmatprep.subr.mxu0 0.0
    %368 = vmatpush1.msra.mxu0 0.0
    %369 = vmatprep.subr.mxu0 0.0
    %370 = vmatpush1.msra.mxu0 0.0
    %371 = vmatprep.subr.mxu0 0.0
    %372 = vmatpush1.msra.mxu0 %v341
    %373 = vmatprep.subr.mxu0 0.0
    %374 = vmatpush1.msra.mxu0 %v340
    %375 = vmatprep.subr.mxu0 0.0
    %376 = vmatpush1.msra.mxu0 %v339
    %377 = vmatprep.subr.mxu0 0.0
    %378 = vmatpush1.msra.mxu0 %v338
    %379 = vmatprep.subr.mxu0 0.0
    %380 = vmatpush2.msra.mxu0 0.0
    %381 = vmatprep.subr.mxu0 0.0
    %382 = vmatpush2.msra.mxu0 0.0
    %383 = vmatprep.subr.mxu0 0.0
    %384 = vmatpush2.msra.mxu0 0.0
    %385 = vmatprep.subr.mxu0 0.0
    %386 = vmatpush2.msra.mxu0 0.0
    %387 = vmatprep.subr.mxu0 0.0
    %388 = vmatpush2.msra.mxu0 0.0
    %389 = vmatprep.subr.mxu0 0.0
    %390 = vmatpush2.msra.mxu0 0.0
    %391 = vmatprep.subr.mxu0 0.0
    %392 = vmatpush2.msra.mxu0 0.0
    %393 = vmatprep.subr.mxu0 0.0
    %394 = vmatpush2.msra.mxu0 0.0
    %395 = vmatprep.subr.mxu0 0.0
    %396 = vmatpush2.msra.mxu0 0.0
    %397 = vmatprep.subr.mxu0 0.0
    %398 = vmatpush2.msra.mxu0 0.0
    %399 = vmatprep.subr.mxu0 0.0
    %400 = vmatpush2.msra.mxu0 0.0
    %401 = vmatprep.subr.mxu0 0.0
    %402 = vmatpush2.msra.mxu0 0.0
    %403 = vmatprep.subr.mxu0 0.0
    %404 = vmatpush2.msra.mxu0 0.0
    %405 = vmatprep.subr.mxu0 0.0
    %406 = vmatpush2.msra.mxu0 0.0
    %407 = vmatprep.subr.mxu0 0.0
    %408 = vmatpush2.msra.mxu0 0.0
    %409 = vmatprep.subr.mxu0 0.0
    %410 = vmatpush2.msra.mxu0 0.0
    %411 = vmatprep.mubr.f32.mxu0 0.0
    %412 = vmatmul.mubr.f32.gmra.mxu0 %v345
    %v413 = vpop.f32.mrf.mxu0
    %v414 = vadd.f32 0.0, %v413
    %v415 = vpop.f32.mrf.mxu0
    %416 = vdwg.mxu0
    %418 = vrot.lane.b32.xlu0 %v414, 96
    %v419 = vpop.permute.xlu0 %418
    %v421 = vadd.f32 %v326, %v419
    %v422 = vtanh.pop %v421
    %v423 = vsub.f32 0.0, %v333
    %425 = vrot.lane.b32.xlu0 %v423, 64
    %v426 = vpop.permute.xlu0 %425
    %v428 = vmul.f32 %v82, %v426
    %v429 = vadd.f32 %v428, 0.0
    %v430 = vsub.f32 1.0, %v333
    %v431 = vmul.f32 %v423, %v430
    %v432 = vrcp.pop 2.0
    %v433 = vmul.f32 %v431, %v432
    %435 = vrot.lane.b32.xlu0 %v433, 64
    %v436 = vpop.permute.xlu0 %435
    %v438 = vmul.f32 %v81, %v436
    %v439 = vadd.f32 %v429, %v438
    %v440 = vsub.f32 2.0, %v333
    %v441 = vmul.f32 %v433, %v440
    %v442 = vrcp.pop 3.0
    %v443 = vmul.f32 %v441, %v442
    %445 = vrot.lane.b32.xlu0 %v443, 64
    %v446 = vpop.permute.xlu0 %445
    %v448 = vmul.f32 %v80, %v446
    %v449 = vadd.f32 %v439, %v448
    %451 = vrot.lane.b32.xlu0 %v422, 32
    %v452 = vpop.permute.xlu0 %451
    %v454 = vmul.f32 %v332, %v452
    %v455 = vsub.f32 %v454, %v449
    %v456 = vld [vmem:[%s8] sm:$0xff]
    %v457 = vld [vmem:[%s8 + $0x8] sm:$0xff]
    %v458 = vld [vmem:[%s8 + $0x10] sm:$0xff]
    %v459 = vld [vmem:[%s8 + $0x18] sm:$0xff]
    %v460 = vld [vmem:[%s9] sm:$0x1]
    %v462 = vlaneseq
    %v463 = vshrl.u32 %v462, 7
    %v464 = vsub.s32 0, %v463
    %v465 = vrot.slane %v460, %v464
    %v468 = vsel %vm89, %v455, 0
    %470 = vmatprep.subr.mxu0 0.0
    %471 = vmatpush1.msra.mxu0 0.0
    %472 = vmatprep.subr.mxu0 0.0
    %473 = vmatpush1.msra.mxu0 0.0
    %474 = vmatprep.subr.mxu0 0.0
    %475 = vmatpush1.msra.mxu0 0.0
    %476 = vmatprep.subr.mxu0 0.0
    %477 = vmatpush1.msra.mxu0 0.0
    %478 = vmatprep.subr.mxu0 0.0
    %479 = vmatpush1.msra.mxu0 0.0
    %480 = vmatprep.subr.mxu0 0.0
    %481 = vmatpush1.msra.mxu0 0.0
    %482 = vmatprep.subr.mxu0 0.0
    %483 = vmatpush1.msra.mxu0 0.0
    %484 = vmatprep.subr.mxu0 0.0
    %485 = vmatpush1.msra.mxu0 0.0
    %486 = vmatprep.subr.mxu0 0.0
    %487 = vmatpush1.msra.mxu0 0.0
    %488 = vmatprep.subr.mxu0 0.0
    %489 = vmatpush1.msra.mxu0 0.0
    %490 = vmatprep.subr.mxu0 0.0
    %491 = vmatpush1.msra.mxu0 0.0
    %492 = vmatprep.subr.mxu0 0.0
    %493 = vmatpush1.msra.mxu0 0.0
    %494 = vmatprep.subr.mxu0 0.0
    %495 = vmatpush1.msra.mxu0 %v459
    %496 = vmatprep.subr.mxu0 0.0
    %497 = vmatpush1.msra.mxu0 %v458
    %498 = vmatprep.subr.mxu0 0.0
    %499 = vmatpush1.msra.mxu0 %v457
    %500 = vmatprep.subr.mxu0 0.0
    %501 = vmatpush1.msra.mxu0 %v456
    %502 = vmatprep.subr.mxu0 0.0
    %503 = vmatpush2.msra.mxu0 0.0
    %504 = vmatprep.subr.mxu0 0.0
    %505 = vmatpush2.msra.mxu0 0.0
    %506 = vmatprep.subr.mxu0 0.0
    %507 = vmatpush2.msra.mxu0 0.0
    %508 = vmatprep.subr.mxu0 0.0
    %509 = vmatpush2.msra.mxu0 0.0
    %510 = vmatprep.subr.mxu0 0.0
    %511 = vmatpush2.msra.mxu0 0.0
    %512 = vmatprep.subr.mxu0 0.0
    %513 = vmatpush2.msra.mxu0 0.0
    %514 = vmatprep.subr.mxu0 0.0
    %515 = vmatpush2.msra.mxu0 0.0
    %516 = vmatprep.subr.mxu0 0.0
    %517 = vmatpush2.msra.mxu0 0.0
    %518 = vmatprep.subr.mxu0 0.0
    %519 = vmatpush2.msra.mxu0 0.0
    %520 = vmatprep.subr.mxu0 0.0
    %521 = vmatpush2.msra.mxu0 0.0
    %522 = vmatprep.subr.mxu0 0.0
    %523 = vmatpush2.msra.mxu0 0.0
    %524 = vmatprep.subr.mxu0 0.0
    %525 = vmatpush2.msra.mxu0 0.0
    %526 = vmatprep.subr.mxu0 0.0
    %527 = vmatpush2.msra.mxu0 0.0
    %528 = vmatprep.subr.mxu0 0.0
    %529 = vmatpush2.msra.mxu0 0.0
    %530 = vmatprep.subr.mxu0 0.0
    %531 = vmatpush2.msra.mxu0 0.0
    %532 = vmatprep.subr.mxu0 0.0
    %533 = vmatpush2.msra.mxu0 0.0
    %534 = vmatprep.mubr.f32.mxu0 0.0
    %535 = vmatmul.mubr.f32.gmra.mxu0 %v468
    %v536 = vpop.f32.mrf.mxu0
    %v537 = vadd.f32 %v465, %v536
    %v538 = vpop.f32.mrf.mxu0
    %539 = vdwg.mxu0
    %vm540 = vcmask 58368
    %541 = vst.msk [vmem:[#allocation8] sm:$0x3] %vm540, %v537
    %vm542 = vcmask 254976
    %543 = vst.msk [vmem:[#allocation9] sm:$0x3] %vm542, %v81
    %544 = vst.msk [vmem:[#allocation9 + $0x2] sm:$0x3] %vm542, %v82
    %s545 = scalar_lea.vmem [#allocation9], 4
    %546 = vst.msk [vmem:[%s545] sm:$0x3] %vm542, %v455
    %548 = vrot.lane.b32.xlu0 %v333, 64
    %v549 = vpop.permute.xlu0 %548
    %551 = vst.msk [vmem:[#allocation11] sm:$0x3] %vm542, %v549
    // Predicated region
    $region54: #{tpu_custom_call.1} parent=1 // pred_check
      _
    $region55: #{tpu_custom_call.1} parent=1 // pred_check_branch
      %553 = sbr.rel (0) target = $region57
    $region56: #{tpu_custom_call.1} parent=1 // pred_region
      %s555 = ssub.s32 32, 32
      %556 = vsyncadd [#allocation4], %s555
      %s558 = sshll.u32 [#allocation8], 4
      %s559 = int_to_ptr.vmem [resolvable:$true] %s558
      %561 = dma.vmem_to_hbm [thread:$0]  %s559, 32, %s10, [#allocation4]
    $region57: #{tpu_custom_call.1} parent=1 // pred_fallthru
      _
    // Predicated region
    $region58: #{tpu_custom_call.1} parent=1 // pred_check
      _
    $region59: #{tpu_custom_call.1} parent=1 // pred_check_branch
      %563 = sbr.rel (0) target = $region61
    $region60: #{tpu_custom_call.1} parent=1 // pred_region
      %s565 = ssub.s32 96, 96
      %566 = vsyncadd [#allocation10], %s565
      %s567 = sshll.u32 [#allocation9], 4
      %s568 = int_to_ptr.vmem [resolvable:$true] %s567
      %573 = dma.vmem_to_hbm [thread:$0]  %s568, 96, %s11, [#allocation10], 32, 32, 2
    $region61: #{tpu_custom_call.1} parent=1 // pred_fallthru
      _
    // Predicated region
    $region62: #{tpu_custom_call.1} parent=1 // pred_check
      _
    $region63: #{tpu_custom_call.1} parent=1 // pred_check_branch
      %575 = sbr.rel (0) target = $region65
    $region64: #{tpu_custom_call.1} parent=1 // pred_region
      %s577 = ssub.s32 32, 32
      %578 = vsyncadd [#allocation10], %s577
      %s580 = sshll.u32 [#allocation11], 4
      %s581 = int_to_ptr.vmem [resolvable:$true] %s580
      %583 = dma.vmem_to_hbm [thread:$0]  %s581, 32, %s12, [#allocation10]
    $region65: #{tpu_custom_call.1} parent=1 // pred_fallthru
      _
    // Predicated region
    $region66: #{tpu_custom_call.1} parent=1 // pred_check
      _
    $region67: #{tpu_custom_call.1} parent=1 // pred_check_branch
      %585 = sbr.rel (0) target = $region69
    $region68: #{tpu_custom_call.1} parent=1 // pred_region
      %586 = dma.done [#allocation4], 32
    $region69: #{tpu_custom_call.1} parent=1 // pred_fallthru
      _
    // Predicated region
    $region70: #{tpu_custom_call.1} parent=1 // pred_check
      _
    $region71: #{tpu_custom_call.1} parent=1 // pred_check_branch
      %588 = sbr.rel (0) target = $region73
    $region72: #{tpu_custom_call.1} parent=1 // pred_region
      %589 = dma.done [#allocation10], 96
    $region73: #{tpu_custom_call.1} parent=1 // pred_fallthru
      _
    // Predicated region
    $region74: #{tpu_custom_call.1} parent=1 // pred_check
      _
    $region75: #{tpu_custom_call.1} parent=1 // pred_check_branch
      %591 = sbr.rel (0) target = $region77
    $region76: #{tpu_custom_call.1} parent=1 // pred_region
      %592 = dma.done [#allocation10], 32
    $region77: #{tpu_custom_call.1} parent=1 // pred_fallthru
      _
    %593 = vsyncpa [#allocation3], 1
    %594 = vsyncpa [#allocation6], 1
    %595 = vsyncpa [#allocation4], 1
    %596 = vsyncpa [#allocation10], 1

</llo_original>
